<compile_context>
chip_gen: v7x
topology: tpu7x:2x2x1
jax: 0.10.0
libtpu: 0.0.40
codegen_flags: <defaults>
</compile_context>

<pallas_src>
import jax
import jax.numpy as jnp
import numpy as np
from jax.experimental import pallas as pl
from jax.experimental.pallas import tpu as pltpu

# ---------------- config (small, consistent with the module) ----------------
B = 8                                   # batch
X_DIM = 16                              # raw input feature dim
DATA_EMB_DIM = 16                       # encoder's data embedding dim
LABEL_EMB_IN = 16                       # label_emb_dim arg to __init__
LABEL_EMB_DIM = DATA_EMB_DIM + LABEL_EMB_IN   # config['label_emb_dim'] = 32
LATENT_DIM = 32                         # config['latent_dim'] (MLP hidden)
N_LABELS = 8                            # config['n_labels']
R = 3                                   # config['r'] = min(label_emb_dim, 3)
V_DIM = N_LABELS * R                    # 24
HEAD_DIM = V_DIM + N_LABELS             # 32  (V | log_var)
EMB_OFF = HEAD_DIM                      # embedding lives at output lanes [32,64)

LANES = 128                             # lane-dense working width
ONES_LANE = LANES - 1                   # bias-folding "ones" lane


# ------------------------------ Pallas kernel -------------------------------
def fused_kernel(x_ref, y_ref, w0x_ref, w0y_ref, b0_ref, w_ref, out_ref):
    # x_ref   : [bt, 16]   f32   raw input features
    # y_ref   : [bt, 8]    f32   label logits / y_hat
    # w0x_ref : [16, 128]  f32   wx placed into cols [32,48)
    # w0y_ref : [8, 128]   f32   wy placed into cols [48,64)
    # b0_ref  : [1, 128]   f32   encoder biases at cols [32,64); col 127 = 1.0
    # w_ref   : [2,128,128] bf16  stage-1 ([w1v|w1l]) and stage-2 (w2v ⊕ w2l)
    #                             slabs, biases folded into row 127
    # out_ref : [bt, 128]  bf16  lanes 0:24 V, 24:32 log_var, 32:64 embedding
    lane = jax.lax.broadcasted_iota(jnp.int32, (1, LANES), 1)   # hoisted once
    data_lanes = jnp.logical_and(lane >= EMB_OFF, lane < EMB_OFF + DATA_EMB_DIM)
    emb_lanes = jnp.logical_and(lane >= EMB_OFF, lane < EMB_OFF + LABEL_EMB_DIM)
    v_lanes = lane < V_DIM

    # stage 0 (f32): encoder straight from raw x / y_hat.  The bias row also
    # seeds the ones lane (lane 127 = 1.0) that carries the folded biases of
    # stages 1-2.  Embedding lands directly at lanes [32,64).
    z0 = (jnp.dot(x_ref[...], w0x_ref[...], preferred_element_type=jnp.float32)
          + jnp.dot(y_ref[...], w0y_ref[...], preferred_element_type=jnp.float32)
          + b0_ref[...])
    emb = jnp.where(data_lanes, jnp.tanh(z0), z0)   # tanh only on data-emb lanes

    # stage 1: fused first layers of BOTH heads ([w1v | w1l]) + ReLU.
    # bf16 operands, f32 accumulation (cast only at the matmul input).
    z1 = jnp.dot(emb.astype(jnp.bfloat16), w_ref[0],
                 preferred_element_type=jnp.float32)
    h = jnp.maximum(z1, 0.0)

    # stage 2: block-diagonal (w2v ⊕ w2l), clamp(max=2), tanh on V lanes only.
    z2 = jnp.dot(h.astype(jnp.bfloat16), w_ref[1],
                 preferred_element_type=jnp.float32)
    clamped = jnp.minimum(z2, 2.0)
    head = jnp.where(v_lanes, jnp.tanh(clamped), clamped)

    # head is exactly 0 on lanes >= HEAD_DIM because w2 columns >= 32 (incl.
    # col 127) are all-zero by construction in pack_weights — do not touch
    # those columns, or the embedding placement silently corrupts.
    out_ref[...] = (head + jnp.where(emb_lanes, emb, 0.0)).astype(out_ref.dtype)


# --------------------------- weight packing ----------------------------------
def pack_weights(ep, hp):
    """One-time host-side packing of encoder + both heads into lane-placed slabs."""
    # stage 0 (f32): x -> data_emb lanes [32,48), y_hat -> label_emb lanes [48,64)
    w0x = jnp.zeros((X_DIM, LANES), jnp.float32)
    w0x = w0x.at[:, EMB_OFF:EMB_OFF + DATA_EMB_DIM].set(ep["wx"])
    w0y = jnp.zeros((N_LABELS, LANES), jnp.float32)
    w0y = w0y.at[:, EMB_OFF + DATA_EMB_DIM:EMB_OFF + LABEL_EMB_DIM].set(ep["wy"])
    b0 = jnp.zeros((1, LANES), jnp.float32)
    b0 = b0.at[0, EMB_OFF:EMB_OFF + DATA_EMB_DIM].set(ep["bx"][0])
    b0 = b0.at[0, EMB_OFF + DATA_EMB_DIM:EMB_OFF + LABEL_EMB_DIM].set(ep["by"][0])
    b0 = b0.at[0, ONES_LANE].set(1.0)          # seeds the ones lane

    # stage 1: [w1v | w1l] reading emb from rows [32,64); hidden_v -> cols 0:32,
    # hidden_l -> cols 32:64; biases in row 127; [127,127]=1 propagates ones.
    w1 = jnp.zeros((LANES, LANES), jnp.float32)
    w1 = w1.at[EMB_OFF:EMB_OFF + LABEL_EMB_DIM, 0:LATENT_DIM].set(hp["w1v"])
    w1 = w1.at[EMB_OFF:EMB_OFF + LABEL_EMB_DIM, LATENT_DIM:2 * LATENT_DIM].set(hp["w1l"])
    w1 = w1.at[ONES_LANE, 0:LATENT_DIM].set(hp["b1v"][0])
    w1 = w1.at[ONES_LANE, LATENT_DIM:2 * LATENT_DIM].set(hp["b1l"][0])
    w1 = w1.at[ONES_LANE, ONES_LANE].set(1.0)

    # stage 2: block-diagonal w2v ⊕ w2l -> V lanes 0:24, log_var lanes 24:32.
    # Columns >= HEAD_DIM (incl. 127) MUST stay exactly zero (see kernel note).
    w2 = jnp.zeros((LANES, LANES), jnp.float32)
    w2 = w2.at[0:LATENT_DIM, 0:V_DIM].set(hp["w2v"])
    w2 = w2.at[LATENT_DIM:2 * LATENT_DIM, V_DIM:HEAD_DIM].set(hp["w2l"])
    w2 = w2.at[ONES_LANE, 0:V_DIM].set(hp["b2v"][0])
    w2 = w2.at[ONES_LANE, V_DIM:HEAD_DIM].set(hp["b2l"][0])

    w12 = jnp.stack([w1, w2]).astype(jnp.bfloat16)
    return w0x, w0y, b0, w12


# ------------------------------ wrapper --------------------------------------
def _pick_batch_tile(bsz):
    """Batch tile: as big as reasonable (amortize ~0.35us/step), but keep >=2
    grid steps for large batches so the "parallel" axis shards across both
    v7x TensorCores.  VMEM is a non-issue at these widths on v5e/v6e/v7x."""
    if bsz <= 8:
        return bsz
    bt = min(1024, bsz)
    if pl.cdiv(bsz, bt) < 2:
        bt = max(8, (((bsz + 1) // 2 + 7) // 8) * 8)
    return bt


def encoder_copulas_forward(x, y_hat, packed):
    """Returns {'embedding','V','log_var'} in bf16 (upcast downstream if needed)."""
    w0x, w0y, b0, w12 = packed
    bsz = x.shape[0]
    bt = _pick_batch_tile(bsz)
    steps = pl.cdiv(bsz, bt)
    padded = steps * bt
    if padded != bsz:                       # ragged batch -> zero-pad, slice after
        pad = padded - bsz
        x = jnp.pad(x, ((0, pad), (0, 0)))
        y_hat = jnp.pad(y_hat, ((0, pad), (0, 0)))

    out = pl.pallas_call(
        fused_kernel,
        out_shape=jax.ShapeDtypeStruct((padded, LANES), jnp.bfloat16),
        grid=(steps,),
        in_specs=[
            pl.BlockSpec((bt, X_DIM), lambda i: (i, 0)),           # x
            pl.BlockSpec((bt, N_LABELS), lambda i: (i, 0)),        # y_hat
            pl.BlockSpec((X_DIM, LANES), lambda i: (0, 0)),        # w0x (VMEM-resident)
            pl.BlockSpec((N_LABELS, LANES), lambda i: (0, 0)),     # w0y
            pl.BlockSpec((1, LANES), lambda i: (0, 0)),            # b0 (+ ones lane)
            pl.BlockSpec((2, LANES, LANES), lambda i: (0, 0, 0)),  # w1 / w2 slabs
        ],
        out_specs=pl.BlockSpec((bt, LANES), lambda i: (i, 0)),
        compiler_params=pltpu.CompilerParams(
            dimension_semantics=("parallel",)),   # megacore / v7x 2-TC split
    )(x, y_hat, w0x, w0y, b0, w12)

    out = out[:bsz]
    enc_doc = {
        "embedding": out[:, EMB_OFF:EMB_OFF + LABEL_EMB_DIM],
        "V": out[:, :V_DIM].reshape(bsz, N_LABELS, R),   # view(-1, n_labels, r)
        "log_var": out[:, V_DIM:HEAD_DIM],
    }
    return enc_doc


# ------------------------------ references -----------------------------------
def _r16(a):
    return a.astype(jnp.bfloat16).astype(jnp.float32)


def mirror_reference(x, y_hat, ep, hp):
    """Pure-JAX reference mirroring the kernel's numerics: f32 stage-0, bf16
    matmul operands with f32 accumulation for stages 1-2, bf16 output store."""
    de = jnp.tanh(x @ ep["wx"] + ep["bx"])
    le = y_hat @ ep["wy"] + ep["by"]
    emb = jnp.concatenate([de, le], axis=-1)
    embr = _r16(emb)
    hv = jnp.maximum(embr @ _r16(hp["w1v"]) + _r16(hp["b1v"]), 0.0)
    hl = jnp.maximum(embr @ _r16(hp["w1l"]) + _r16(hp["b1l"]), 0.0)
    v = jnp.tanh(jnp.minimum(_r16(hv) @ _r16(hp["w2v"]) + _r16(hp["b2v"]), 2.0))
    lv = jnp.minimum(_r16(hl) @ _r16(hp["w2l"]) + _r16(hp["b2l"]), 2.0)
    return _r16(emb), _r16(v).reshape(-1, N_LABELS, R), _r16(lv)


def reference_f32(x, y_hat, ep, hp):
    """Full-f32 module semantics (encoder + both heads)."""
    de = jnp.tanh(x @ ep["wx"] + ep["bx"])
    le = y_hat @ ep["wy"] + ep["by"]
    emb = jnp.concatenate([de, le], axis=-1)
    hv = jnp.maximum(emb @ hp["w1v"] + hp["b1v"], 0.0)
    v = jnp.tanh(jnp.minimum(hv @ hp["w2v"] + hp["b2v"], 2.0))
    hl = jnp.maximum(emb @ hp["w1l"] + hp["b1l"], 0.0)
    lv = jnp.minimum(hl @ hp["w2l"] + hp["b2l"], 2.0)
    return emb, v.reshape(-1, N_LABELS, R), lv


# --------------------------- parameter init ----------------------------------
def _linear_init(kw, kb, fan_in, fan_out):
    w = jax.random.normal(kw, (fan_in, fan_out), jnp.float32) / np.sqrt(fan_in)
    b = 0.1 * jax.random.normal(kb, (1, fan_out), jnp.float32)
    return w, b


def make_params(key):
    ks = jax.random.split(key, 12)
    wx, bx = _linear_init(ks[0], ks[1], X_DIM, DATA_EMB_DIM)
    wy, by = _linear_init(ks[2], ks[3], N_LABELS, LABEL_EMB_IN)
    enc_params = {"wx": wx, "bx": bx, "wy": wy, "by": by}

    w1v, b1v = _linear_init(ks[4], ks[5], LABEL_EMB_DIM, LATENT_DIM)
    w2v, b2v = _linear_init(ks[6], ks[7], LATENT_DIM, V_DIM)
    w1l, b1l = _linear_init(ks[8], ks[9], LABEL_EMB_DIM, LATENT_DIM)
    w2l, b2l = _linear_init(ks[10], ks[11], LATENT_DIM, N_LABELS)
    head_params = {"w1v": w1v, "b1v": b1v, "w2v": w2v, "b2v": b2v,
                   "w1l": w1l, "b1l": b1l, "w2l": w2l, "b2l": b2l}
    return enc_params, head_params


# ------------------------------- main -----------------------------------------
if __name__ == "__main__":
    key = jax.random.PRNGKey(0)
    k_params, k_x, k_y = jax.random.split(key, 3)
    enc_params, head_params = make_params(k_params)
    packed = pack_weights(enc_params, head_params)   # one-time host-side packing

    x = jax.random.normal(k_x, (B, X_DIM), jnp.float32)
    y_hat = jax.nn.sigmoid(jax.random.normal(k_y, (B, N_LABELS), jnp.float32))

    enc_doc = encoder_copulas_forward(x, y_hat, packed)
    jax.block_until_ready(enc_doc["V"])
    jax.block_until_ready(enc_doc["log_var"])

    assert enc_doc["V"].shape == (B, N_LABELS, R)
    assert enc_doc["log_var"].shape == (B, N_LABELS)
    assert enc_doc["embedding"].shape == (B, LABEL_EMB_DIM)

    V_k = np.asarray(enc_doc["V"].astype(jnp.float32))
    lv_k = np.asarray(enc_doc["log_var"].astype(jnp.float32))
    emb_k = np.asarray(enc_doc["embedding"].astype(jnp.float32))

    # Strict structural check against a reference mirroring the kernel numerics.
    emb_m, V_m, lv_m = mirror_reference(x, y_hat, enc_params, head_params)
    np.testing.assert_allclose(V_k, np.asarray(V_m), rtol=1e-2, atol=1e-2)
    np.testing.assert_allclose(lv_k, np.asarray(lv_m), rtol=1e-2, atol=1e-2)
    np.testing.assert_allclose(emb_k, np.asarray(emb_m), rtol=1e-2, atol=1e-2)

    # Looser check against the full-f32 module semantics (deviations: bf16
    # operands in the head matmuls and the bf16 output store; stage-0 is f32).
    emb_f, V_f, lv_f = reference_f32(x, y_hat, enc_params, head_params)
    np.testing.assert_allclose(V_k, np.asarray(V_f), rtol=1e-1, atol=1e-1)
    np.testing.assert_allclose(lv_k, np.asarray(lv_f), rtol=1e-1, atol=1e-1)
    np.testing.assert_allclose(emb_k, np.asarray(emb_f), rtol=1e-1, atol=1e-1)

    print("KERNEL_OK")
</pallas_src>

<mosaic_0001>
module attributes {stable_mosaic.version = 11 : i64} {
  func.func @fused_kernel(%arg0: i32, %arg1: memref<8x16xf32, #tpu.memory_space<vmem>>, %arg2: memref<8x8xf32, #tpu.memory_space<vmem>>, %arg3: memref<16x128xf32, #tpu.memory_space<vmem>>, %arg4: memref<8x128xf32, #tpu.memory_space<vmem>>, %arg5: memref<1x128xf32, #tpu.memory_space<vmem>>, %arg6: memref<2x128x128xbf16, #tpu.memory_space<vmem>>, %arg7: memref<8x128xbf16, #tpu.memory_space<vmem>>) attributes {dimension_semantics = [#tpu.dimension_semantics<parallel>], iteration_bounds = array<i64: 1>, scalar_prefetch = 0 : i64, scratch_operands = 0 : i64, tpu.core_type = #tpu.core_type<tc>, window_params = [{transform_indices = @transform_0, window_bounds = array<i64: 8, 16>}, {transform_indices = @transform_1, window_bounds = array<i64: 8, 8>}, {pipeline_mode = #tpu.pipeline_mode<synchronous>, transform_indices = @transform_2, window_bounds = array<i64: 16, 128>}, {pipeline_mode = #tpu.pipeline_mode<synchronous>, transform_indices = @transform_3, window_bounds = array<i64: 8, 128>}, {pipeline_mode = #tpu.pipeline_mode<synchronous>, transform_indices = @transform_4, window_bounds = array<i64: 1, 128>}, {pipeline_mode = #tpu.pipeline_mode<synchronous>, transform_indices = @transform_5, window_bounds = array<i64: 2, 128, 128>}, {transform_indices = @transform_6, window_bounds = array<i64: 8, 128>}]} {
    %0 = tpu.iota {dimensions = array<i32: 1>} : vector<1x128xi32>
    %c32_i32 = arith.constant 32 : i32
    %1 = vector.broadcast %c32_i32 : i32 to vector<1x128xi32>
    %2 = arith.cmpi sge, %0, %1 : vector<1x128xi32>
    %c48_i32 = arith.constant 48 : i32
    %3 = vector.broadcast %c48_i32 : i32 to vector<1x128xi32>
    %4 = arith.cmpi slt, %0, %3 : vector<1x128xi32>
    %5 = arith.andi %2, %4 : vector<1x128xi1>
    %c32_i32_0 = arith.constant 32 : i32
    %6 = vector.broadcast %c32_i32_0 : i32 to vector<1x128xi32>
    %7 = arith.cmpi sge, %0, %6 : vector<1x128xi32>
    %c64_i32 = arith.constant 64 : i32
    %8 = vector.broadcast %c64_i32 : i32 to vector<1x128xi32>
    %9 = arith.cmpi slt, %0, %8 : vector<1x128xi32>
    %10 = arith.andi %7, %9 : vector<1x128xi1>
    %c24_i32 = arith.constant 24 : i32
    %11 = vector.broadcast %c24_i32 : i32 to vector<1x128xi32>
    %12 = arith.cmpi slt, %0, %11 : vector<1x128xi32>
    %c0 = arith.constant 0 : index
    %c0_1 = arith.constant 0 : index
    %13 = vector.load %arg1[%c0, %c0_1] : memref<8x16xf32, #tpu.memory_space<vmem>>, vector<8x16xf32>
    %c0_2 = arith.constant 0 : index
    %c0_3 = arith.constant 0 : index
    %14 = vector.load %arg3[%c0_2, %c0_3] : memref<16x128xf32, #tpu.memory_space<vmem>>, vector<16x128xf32>
    %cst = arith.constant dense<0.000000e+00> : vector<8x128xf32>
    %15 = tpu.matmul %13, %14, %cst {dimension_numbers = #tpu.dot_dimension_numbers<[1], [0], [0], [1], [0, 0, 1, 1], [], []>} : vector<8x16xf32>, vector<16x128xf32>, vector<8x128xf32> -> vector<8x128xf32>
    %c0_4 = arith.constant 0 : index
    %c0_5 = arith.constant 0 : index
    %16 = vector.load %arg2[%c0_4, %c0_5] : memref<8x8xf32, #tpu.memory_space<vmem>>, vector<8x8xf32>
    %c0_6 = arith.constant 0 : index
    %c0_7 = arith.constant 0 : index
    %17 = vector.load %arg4[%c0_6, %c0_7] : memref<8x128xf32, #tpu.memory_space<vmem>>, vector<8x128xf32>
    %cst_8 = arith.constant dense<0.000000e+00> : vector<8x128xf32>
    %18 = tpu.matmul %16, %17, %cst_8 {dimension_numbers = #tpu.dot_dimension_numbers<[1], [0], [0], [1], [0, 0, 1, 1], [], []>} : vector<8x8xf32>, vector<8x128xf32>, vector<8x128xf32> -> vector<8x128xf32>
    %19 = arith.addf %15, %18 : vector<8x128xf32>
    %c0_9 = arith.constant 0 : index
    %c0_10 = arith.constant 0 : index
    %20 = vector.load %arg5[%c0_9, %c0_10] : memref<1x128xf32, #tpu.memory_space<vmem>>, vector<1x128xf32>
    %21 = vector.broadcast %20 : vector<1x128xf32> to vector<8x128xf32>
    %22 = arith.addf %19, %21 : vector<8x128xf32>
    %23 = math.tanh %22 : vector<8x128xf32>
    %24 = vector.shape_cast %5 : vector<1x128xi1> to vector<1x128xi1>
    %25 = vector.broadcast %24 : vector<1x128xi1> to vector<8x128xi1>
    %26 = arith.select %25, %23, %22 : vector<8x128xi1>, vector<8x128xf32>
    %27 = arith.truncf %26 : vector<8x128xf32> to vector<8x128xbf16>
    %c0_11 = arith.constant 0 : index
    %c0_12 = arith.constant 0 : index
    %c0_13 = arith.constant 0 : index
    %28 = vector.load %arg6[%c0_11, %c0_12, %c0_13] : memref<2x128x128xbf16, #tpu.memory_space<vmem>>, vector<1x128x128xbf16>
    %29 = vector.shape_cast %28 : vector<1x128x128xbf16> to vector<128x128xbf16>
    %cst_14 = arith.constant dense<0.000000e+00> : vector<8x128xf32>
    %30 = tpu.matmul %27, %29, %cst_14 {dimension_numbers = #tpu.dot_dimension_numbers<[1], [0], [0], [1], [0, 0, 1, 1], [], []>} : vector<8x128xbf16>, vector<128x128xbf16>, vector<8x128xf32> -> vector<8x128xf32>
    %cst_15 = arith.constant 0.000000e+00 : f32
    %31 = vector.broadcast %cst_15 : f32 to vector<8x128xf32>
    %32 = arith.maximumf %30, %31 : vector<8x128xf32>
    %33 = arith.truncf %32 : vector<8x128xf32> to vector<8x128xbf16>
    %c1 = arith.constant 1 : index
    %c0_16 = arith.constant 0 : index
    %c0_17 = arith.constant 0 : index
    %34 = vector.load %arg6[%c1, %c0_16, %c0_17] : memref<2x128x128xbf16, #tpu.memory_space<vmem>>, vector<1x128x128xbf16>
    %35 = vector.shape_cast %34 : vector<1x128x128xbf16> to vector<128x128xbf16>
    %cst_18 = arith.constant dense<0.000000e+00> : vector<8x128xf32>
    %36 = tpu.matmul %33, %35, %cst_18 {dimension_numbers = #tpu.dot_dimension_numbers<[1], [0], [0], [1], [0, 0, 1, 1], [], []>} : vector<8x128xbf16>, vector<128x128xbf16>, vector<8x128xf32> -> vector<8x128xf32>
    %cst_19 = arith.constant 2.000000e+00 : f32
    %37 = vector.broadcast %cst_19 : f32 to vector<8x128xf32>
    %38 = arith.minimumf %36, %37 : vector<8x128xf32>
    %39 = math.tanh %38 : vector<8x128xf32>
    %40 = vector.shape_cast %12 : vector<1x128xi1> to vector<1x128xi1>
    %41 = vector.broadcast %40 : vector<1x128xi1> to vector<8x128xi1>
    %42 = arith.select %41, %39, %38 : vector<8x128xi1>, vector<8x128xf32>
    %cst_20 = arith.constant 0.000000e+00 : f32
    %43 = vector.shape_cast %10 : vector<1x128xi1> to vector<1x128xi1>
    %44 = vector.broadcast %43 : vector<1x128xi1> to vector<8x128xi1>
    %45 = vector.broadcast %cst_20 : f32 to vector<8x128xf32>
    %46 = arith.select %44, %26, %45 : vector<8x128xi1>, vector<8x128xf32>
    %47 = arith.addf %42, %46 : vector<8x128xf32>
    %48 = arith.truncf %47 : vector<8x128xf32> to vector<8x128xbf16>
    %c0_21 = arith.constant 0 : index
    %c0_22 = arith.constant 0 : index
    %49 = vector.load %arg7[%c0_21, %c0_22] : memref<8x128xbf16, #tpu.memory_space<vmem>>, vector<8x128xbf16>
    tpu.vector_store %arg7[%c0_21, %c0_22], %48 {strides = array<i32>} : memref<8x128xbf16, #tpu.memory_space<vmem>>, vector<8x128xbf16>,
    return
  }
  func.func @transform_0(%arg0: i32) -> (i32, i32) {
    %c0_i32 = arith.constant 0 : i32
    %c0_i32_0 = arith.constant 0 : i32
    return %arg0, %c0_i32 : i32, i32
  }
  func.func @transform_1(%arg0: i32) -> (i32, i32) {
    %c0_i32 = arith.constant 0 : i32
    %c0_i32_0 = arith.constant 0 : i32
    return %arg0, %c0_i32 : i32, i32
  }
  func.func @transform_2(%arg0: i32) -> (i32, i32) {
    %c0_i32 = arith.constant 0 : i32
    %c0_i32_0 = arith.constant 0 : i32
    %c0_i32_1 = arith.constant 0 : i32
    return %c0_i32, %c0_i32_0 : i32, i32
  }
  func.func @transform_3(%arg0: i32) -> (i32, i32) {
    %c0_i32 = arith.constant 0 : i32
    %c0_i32_0 = arith.constant 0 : i32
    %c0_i32_1 = arith.constant 0 : i32
    return %c0_i32, %c0_i32_0 : i32, i32
  }
  func.func @transform_4(%arg0: i32) -> (i32, i32) {
    %c0_i32 = arith.constant 0 : i32
    %c0_i32_0 = arith.constant 0 : i32
    %c0_i32_1 = arith.constant 0 : i32
    return %c0_i32, %c0_i32_0 : i32, i32
  }
  func.func @transform_5(%arg0: i32) -> (i32, i32, i32) {
    %c0_i32 = arith.constant 0 : i32
    %c0_i32_0 = arith.constant 0 : i32
    %c0_i32_1 = arith.constant 0 : i32
    %c0_i32_2 = arith.constant 0 : i32
    return %c0_i32, %c0_i32_0, %c0_i32_1 : i32, i32, i32
  }
  func.func @transform_6(%arg0: i32) -> (i32, i32) {
    %c0_i32 = arith.constant 0 : i32
    %c0_i32_0 = arith.constant 0 : i32
    return %arg0, %c0_i32 : i32, i32
  }
}

</mosaic_0001>

<llo_original>
// kernel: tpu_custom_call.1
$region0: #{tpu_custom_call.1}
  #allocation0 [shape = 'u32[]', space=smem, size = 0x4, offset = 0x4, fixed_abs, tag = 'smem constant byte address 0x4 - core index']
  #allocation1 [shape = 'u32[144,128]{1,0:T(1,128)}', space=vmem, size = 0x12000, scoped, tag = 'internal scratch']
  %s0 = inlined_call_operand.hbm [shape: f32[8,16], index: 0, kind: input, shape index: {}]
  %s1 = inlined_call_operand.hbm [shape: f32[8,8], index: 1, kind: input, shape index: {}]
  %s2 = inlined_call_operand.hbm [shape: f32[16,128], index: 2, kind: input, shape index: {}]
  %s3 = inlined_call_operand.vmem [shape: f32[8,128], index: 3, kind: input, shape index: {}]
  %s4 = inlined_call_operand.vmem [shape: f32[1,128], index: 4, kind: input, shape index: {}]
  %s5 = inlined_call_operand.hbm [shape: bf16[2,128,128], index: 5, kind: input, shape index: {}]
  %s6 = inlined_call_operand.hbm [shape: bf16[8,128], index: 6, kind: output, shape index: {}]
  %s7 = sld [smem:[#allocation0]]
  $region50: #{tpu_custom_call.1} parent=0
    _
  %s9 = ssub.s32 1, %s7
  %s10 = scalar_select 0, %s9, %s7
  $region1: #{tpu_custom_call.1} parent=0
    #allocation2 [shape = 'u8[4096]{0}', space=vmem, size = 0x1000, scoped, tag = 'input window, operand 0, single buffered']
    #allocation3 [shape = 's32[1]{0}', space=sflag, size = 0x4, scoped, tag = 'scoped memory for tpu_custom_call.1']
    #allocation4 [shape = 's32[1]{0}', space=sflag, size = 0x4, scoped, tag = 'scoped memory for tpu_custom_call.1']
    #allocation5 [shape = 'u8[4096]{0}', space=vmem, size = 0x1000, scoped, tag = 'input window, operand 1, single buffered']
    #allocation6 [shape = 's32[1]{0}', space=sflag, size = 0x4, scoped, tag = 'scoped memory for tpu_custom_call.1']
    #allocation7 [shape = 'u8[8192]{0}', space=vmem, size = 0x2000, scoped, tag = 'input window, operand 2, single buffered']
    #allocation8 [shape = 'u8[65536]{0}', space=vmem, size = 0x10000, scoped, tag = 'input window, operand 5, single buffered']
    #allocation9 [shape = 's32[1]{0}', space=sflag, size = 0x4, scoped, tag = 'scoped memory for tpu_custom_call.1']
    #allocation10 [shape = 'u8[2048]{0}', space=vmem, size = 0x800, scoped, tag = 'output window, operand 0, single buffered']
    %11 = vsyncpa [#allocation3], 0
    %12 = vsyncpa [#allocation6], 0
    %13 = vsyncpa [#allocation9], 0
    %14 = vsyncpa [#allocation4], 0
    // Predicated region
    $region2: #{tpu_custom_call.1} parent=1 // pred_check
      _
    $region3: #{tpu_custom_call.1} parent=1 // pred_check_branch
      %16 = sbr.rel (0) target = $region5
    $region4: #{tpu_custom_call.1} parent=1 // pred_region
      %s18 = ssub.s32 128, 128
      %19 = vsyncadd [#allocation3], %s18
      %s21 = sshll.u32 [#allocation2], 4
      %s22 = int_to_ptr.vmem [resolvable:$true] %s21
      %24 = dma.hbm_to_vmem [thread:$0]  %s0, 128, %s22, [#allocation3]
    $region5: #{tpu_custom_call.1} parent=1 // pred_fallthru
      _
    // Predicated region
    $region6: #{tpu_custom_call.1} parent=1 // pred_check
      _
    $region7: #{tpu_custom_call.1} parent=1 // pred_check_branch
      %26 = sbr.rel (0) target = $region9
    $region8: #{tpu_custom_call.1} parent=1 // pred_region
      %s28 = ssub.s32 128, 128
      %29 = vsyncadd [#allocation6], %s28
      %s31 = sshll.u32 [#allocation5], 4
      %s32 = int_to_ptr.vmem [resolvable:$true] %s31
      %34 = dma.hbm_to_vmem [thread:$0]  %s1, 128, %s32, [#allocation6]
    $region9: #{tpu_custom_call.1} parent=1 // pred_fallthru
      _
    // Predicated region
    $region10: #{tpu_custom_call.1} parent=1 // pred_check
      _
    $region11: #{tpu_custom_call.1} parent=1 // pred_check_branch
      %36 = sbr.rel (0) target = $region13
    $region12: #{tpu_custom_call.1} parent=1 // pred_region
      %s38 = ssub.s32 256, 256
      %39 = vsyncadd [#allocation6], %s38
      %s40 = sshll.u32 [#allocation7], 4
      %s41 = int_to_ptr.vmem [resolvable:$true] %s40
      %46 = dma.hbm_to_vmem [thread:$0]  %s2, 256, %s41, [#allocation6], 128, 128, 8
    $region13: #{tpu_custom_call.1} parent=1 // pred_fallthru
      _
    // Predicated region
    $region14: #{tpu_custom_call.1} parent=1 // pred_check
      _
    $region15: #{tpu_custom_call.1} parent=1 // pred_check_branch
      %48 = sbr.rel (0) target = $region17
    $region16: #{tpu_custom_call.1} parent=1 // pred_region
      _
    $region17: #{tpu_custom_call.1} parent=1 // pred_fallthru
      _
    // Predicated region
    $region18: #{tpu_custom_call.1} parent=1 // pred_check
      _
    $region19: #{tpu_custom_call.1} parent=1 // pred_check_branch
      %50 = sbr.rel (0) target = $region21
    $region20: #{tpu_custom_call.1} parent=1 // pred_region
      _
    $region21: #{tpu_custom_call.1} parent=1 // pred_fallthru
      _
    // Predicated region
    $region22: #{tpu_custom_call.1} parent=1 // pred_check
      _
    $region23: #{tpu_custom_call.1} parent=1 // pred_check_branch
      %52 = sbr.rel (0) target = $region25
    $region24: #{tpu_custom_call.1} parent=1 // pred_region
      %s54 = ssub.s32 2048, 2048
      %55 = vsyncadd [#allocation9], %s54
      %s56 = sshll.u32 [#allocation8], 4
      %s57 = int_to_ptr.vmem [resolvable:$true] %s56
      %62 = dma.hbm_to_vmem [thread:$0]  %s5, 2048, %s57, [#allocation9], 64, 64, 4
    $region25: #{tpu_custom_call.1} parent=1 // pred_fallthru
      _
    // Predicated region
    $region26: #{tpu_custom_call.1} parent=1 // pred_check
      _
    $region27: #{tpu_custom_call.1} parent=1 // pred_check_branch
      %64 = sbr.rel (0) target = $region29
    $region28: #{tpu_custom_call.1} parent=1 // pred_region
      %65 = dma.done [#allocation3], 128
    $region29: #{tpu_custom_call.1} parent=1 // pred_fallthru
      _
    // Predicated region
    $region30: #{tpu_custom_call.1} parent=1 // pred_check
      _
    $region31: #{tpu_custom_call.1} parent=1 // pred_check_branch
      %67 = sbr.rel (0) target = $region33
    $region32: #{tpu_custom_call.1} parent=1 // pred_region
      %68 = dma.done [#allocation6], 128
    $region33: #{tpu_custom_call.1} parent=1 // pred_fallthru
      _
    // Predicated region
    $region34: #{tpu_custom_call.1} parent=1 // pred_check
      _
    $region35: #{tpu_custom_call.1} parent=1 // pred_check_branch
      %70 = sbr.rel (0) target = $region37
    $region36: #{tpu_custom_call.1} parent=1 // pred_region
      %71 = dma.done [#allocation6], 256
    $region37: #{tpu_custom_call.1} parent=1 // pred_fallthru
      _
    // Predicated region
    $region38: #{tpu_custom_call.1} parent=1 // pred_check
      _
    $region39: #{tpu_custom_call.1} parent=1 // pred_check_branch
      %73 = sbr.rel (0) target = $region41
    $region40: #{tpu_custom_call.1} parent=1 // pred_region
      %74 = dma.done [#allocation9], 2048
    $region41: #{tpu_custom_call.1} parent=1 // pred_fallthru
      _
    %v76 = vlaneseq
    %v77 = vand.u32 %v76, 127
    %vm78 = vcmp.ge.s32.totalorder %v77, 32
    %vm79 = vcmp.lt.s32.totalorder %v77, 48
    %vm80 = vmand %vm78, %vm79
    %vm81 = vcmp.lt.s32.totalorder %v77, 64
    %vm82 = vmand %vm78, %vm81
    %vm83 = vcmp.lt.s32.totalorder %v77, 24
    %v84 = vld [vmem:[#allocation2] sm:$0xff]
    %v85 = vld [vmem:[#allocation7] sm:$0xff]
    %v86 = vld [vmem:[#allocation7 + $0x8] sm:$0xff]
    %v87 = vld [vmem:[#allocation5] sm:$0xff]
    %v88 = vld [vmem:[%s3] sm:$0xff]
    %vm89 = vcmask 64512
    %v91 = vsel %vm89, %v87, 0
    %93 = vmatprep.subr.mxu0 0.0
    %94 = vmatpush1.msra.mxu0 %v88
    %95 = vmatprep.subr.mxu0 0.0
    %96 = vmatpush1.msra.mxu0 0.0
    %97 = vmatprep.subr.mxu0 0.0
    %98 = vmatpush1.msra.mxu0 0.0
    %99 = vmatprep.subr.mxu0 0.0
    %100 = vmatpush1.msra.mxu0 0.0
    %101 = vmatprep.subr.mxu0 0.0
    %102 = vmatpush1.msra.mxu0 0.0
    %103 = vmatprep.subr.mxu0 0.0
    %104 = vmatpush1.msra.mxu0 0.0
    %105 = vmatprep.subr.mxu0 0.0
    %106 = vmatpush1.msra.mxu0 0.0
    %107 = vmatprep.subr.mxu0 0.0
    %108 = vmatpush1.msra.mxu0 0.0
    %109 = vmatprep.subr.mxu0 0.0
    %110 = vmatpush1.msra.mxu0 0.0
    %111 = vmatprep.subr.mxu0 0.0
    %112 = vmatpush1.msra.mxu0 0.0
    %113 = vmatprep.subr.mxu0 0.0
    %114 = vmatpush1.msra.mxu0 0.0
    %115 = vmatprep.subr.mxu0 0.0
    %116 = vmatpush1.msra.mxu0 0.0
    %117 = vmatprep.subr.mxu0 0.0
    %118 = vmatpush1.msra.mxu0 0.0
    %119 = vmatprep.subr.mxu0 0.0
    %120 = vmatpush1.msra.mxu0 0.0
    %121 = vmatprep.subr.mxu0 0.0
    %122 = vmatpush1.msra.mxu0 0.0
    %123 = vmatprep.subr.mxu0 0.0
    %124 = vmatpush1.msra.mxu0 0.0
    %125 = vmatprep.subr.mxu0 0.0
    %126 = vmatpush1.msra.mxu0 0.0
    %127 = vmatprep.subr.mxu0 0.0
    %128 = vmatpush1.msra.mxu0 0.0
    %129 = vmatprep.subr.mxu0 0.0
    %130 = vmatpush1.msra.mxu0 0.0
    %131 = vmatprep.subr.mxu0 0.0
    %132 = vmatpush1.msra.mxu0 0.0
    %133 = vmatprep.subr.mxu0 0.0
    %134 = vmatpush1.msra.mxu0 0.0
    %135 = vmatprep.subr.mxu0 0.0
    %136 = vmatpush1.msra.mxu0 0.0
    %137 = vmatprep.subr.mxu0 0.0
    %138 = vmatpush1.msra.mxu0 0.0
    %139 = vmatprep.subr.mxu0 0.0
    %140 = vmatpush1.msra.mxu0 0.0
    %141 = vmatprep.subr.mxu0 0.0
    %142 = vmatpush1.msra.mxu0 0.0
    %143 = vmatprep.subr.mxu0 0.0
    %144 = vmatpush1.msra.mxu0 0.0
    %145 = vmatprep.subr.mxu0 0.0
    %146 = vmatpush1.msra.mxu0 0.0
    %147 = vmatprep.subr.mxu0 0.0
    %148 = vmatpush1.msra.mxu0 0.0
    %149 = vmatprep.subr.mxu0 0.0
    %150 = vmatpush1.msra.mxu0 0.0
    %151 = vmatprep.subr.mxu0 0.0
    %152 = vmatpush1.msra.mxu0 0.0
    %153 = vmatprep.subr.mxu0 0.0
    %154 = vmatpush1.msra.mxu0 0.0
    %155 = vmatprep.subr.mxu0 0.0
    %156 = vmatpush1.msra.mxu0 0.0
    %157 = vmatprep.mubr.f32.mxu0 0.0
    %158 = vmatmul.mubr.f32.gmra.mrb[0].mxu0 %v91
    %v159 = vpop.f32.mrb[0].mxu0
    %v160 = vadd.f32 0.0, %v159
    %v161 = vpop.f32.mrb[0].mxu0
    %162 = vdwg.mxu0
    %vm163 = vcmask 130048
    %v165 = vsel %vm163, %v84, 0
    %167 = vmatprep.subr.mxu0 0.0
    %168 = vmatpush1.msra.mxu0 %v85
    %169 = vmatprep.subr.mxu0 0.0
    %170 = vmatpush1.msra.mxu0 %v86
    %171 = vmatprep.subr.mxu0 0.0
    %172 = vmatpush1.msra.mxu0 0.0
    %173 = vmatprep.subr.mxu0 0.0
    %174 = vmatpush1.msra.mxu0 0.0
    %175 = vmatprep.subr.mxu0 0.0
    %176 = vmatpush1.msra.mxu0 0.0
    %177 = vmatprep.subr.mxu0 0.0
    %178 = vmatpush1.msra.mxu0 0.0
    %179 = vmatprep.subr.mxu0 0.0
    %180 = vmatpush1.msra.mxu0 0.0
    %181 = vmatprep.subr.mxu0 0.0
    %182 = vmatpush1.msra.mxu0 0.0
    %183 = vmatprep.subr.mxu0 0.0
    %184 = vmatpush1.msra.mxu0 0.0
    %185 = vmatprep.subr.mxu0 0.0
    %186 = vmatpush1.msra.mxu0 0.0
    %187 = vmatprep.subr.mxu0 0.0
    %188 = vmatpush1.msra.mxu0 0.0
    %189 = vmatprep.subr.mxu0 0.0
    %190 = vmatpush1.msra.mxu0 0.0
    %191 = vmatprep.subr.mxu0 0.0
    %192 = vmatpush1.msra.mxu0 0.0
    %193 = vmatprep.subr.mxu0 0.0
    %194 = vmatpush1.msra.mxu0 0.0
    %195 = vmatprep.subr.mxu0 0.0
    %196 = vmatpush1.msra.mxu0 0.0
    %197 = vmatprep.subr.mxu0 0.0
    %198 = vmatpush1.msra.mxu0 0.0
    %199 = vmatprep.subr.mxu0 0.0
    %200 = vmatpush1.msra.mxu0 0.0
    %201 = vmatprep.subr.mxu0 0.0
    %202 = vmatpush1.msra.mxu0 0.0
    %203 = vmatprep.subr.mxu0 0.0
    %204 = vmatpush1.msra.mxu0 0.0
    %205 = vmatprep.subr.mxu0 0.0
    %206 = vmatpush1.msra.mxu0 0.0
    %207 = vmatprep.subr.mxu0 0.0
    %208 = vmatpush1.msra.mxu0 0.0
    %209 = vmatprep.subr.mxu0 0.0
    %210 = vmatpush1.msra.mxu0 0.0
    %211 = vmatprep.subr.mxu0 0.0
    %212 = vmatpush1.msra.mxu0 0.0
    %213 = vmatprep.subr.mxu0 0.0
    %214 = vmatpush1.msra.mxu0 0.0
    %215 = vmatprep.subr.mxu0 0.0
    %216 = vmatpush1.msra.mxu0 0.0
    %217 = vmatprep.subr.mxu0 0.0
    %218 = vmatpush1.msra.mxu0 0.0
    %219 = vmatprep.subr.mxu0 0.0
    %220 = vmatpush1.msra.mxu0 0.0
    %221 = vmatprep.subr.mxu0 0.0
    %222 = vmatpush1.msra.mxu0 0.0
    %223 = vmatprep.subr.mxu0 0.0
    %224 = vmatpush1.msra.mxu0 0.0
    %225 = vmatprep.subr.mxu0 0.0
    %226 = vmatpush1.msra.mxu0 0.0
    %227 = vmatprep.subr.mxu0 0.0
    %228 = vmatpush1.msra.mxu0 0.0
    %229 = vmatprep.subr.mxu0 0.0
    %230 = vmatpush1.msra.mxu0 0.0
    %231 = vmatprep.mubr.f32.mxu0 0.0
    %232 = vmatmul.mubr.f32.gmra.mrb[0].mxu0 %v165
    %v233 = vpop.f32.mrb[0].mxu0
    %v234 = vadd.f32 %v160, %v233
    %v235 = vpop.f32.mrb[0].mxu0
    %236 = vdwg.mxu0
    %v237 = vld [vmem:[%s4] sm:$0x1]
    %v239 = vlaneseq
    %v240 = vshrl.u32 %v239, 7
    %v241 = vsub.s32 0, %v240
    %v242 = vrot.slane %v237, %v241
    %v244 = vadd.f32 %v234, %v242
    %v245 = vtanh.pop %v244
    %v246 = vsel %vm80, 1, 0
    %vm247 = vcmp.eq.s32.totalorder %v246, 1
    %v248 = vsel %vm247, %v245, %v244
    %v249 = vpack.c.bf16 %v248, %v248
    %v250 = vld [vmem:[#allocation8] sm:$0xf]
    %v251 = vld [vmem:[#allocation8 + $0x4] sm:$0xf]
    %v252 = vld [vmem:[#allocation8 + $0x8] sm:$0xf]
    %v253 = vld [vmem:[#allocation8 + $0xc] sm:$0xf]
    %v254 = vld [vmem:[#allocation8 + $0x10] sm:$0xf]
    %v255 = vld [vmem:[#allocation8 + $0x14] sm:$0xf]
    %v256 = vld [vmem:[#allocation8 + $0x18] sm:$0xf]
    %v257 = vld [vmem:[#allocation8 + $0x1c] sm:$0xf]
    %v258 = vld [vmem:[#allocation8 + $0x20] sm:$0xf]
    %v259 = vld [vmem:[#allocation8 + $0x24] sm:$0xf]
    %v260 = vld [vmem:[#allocation8 + $0x28] sm:$0xf]
    %v261 = vld [vmem:[#allocation8 + $0x2c] sm:$0xf]
    %v262 = vld [vmem:[#allocation8 + $0x30] sm:$0xf]
    %v263 = vld [vmem:[#allocation8 + $0x34] sm:$0xf]
    %v264 = vld [vmem:[#allocation8 + $0x38] sm:$0xf]
    %v265 = vld [vmem:[#allocation8 + $0x3c] sm:$0xf]
    %v282 = vunpack.c.l.b16 %v250
    %v283 = vunpack.c.l.b16 %v251
    %v284 = vunpack.c.l.b16 %v252
    %v285 = vunpack.c.l.b16 %v253
    %v286 = vunpack.c.l.b16 %v254
    %v287 = vunpack.c.l.b16 %v255
    %v288 = vunpack.c.l.b16 %v256
    %v289 = vunpack.c.l.b16 %v257
    %v290 = vunpack.c.l.b16 %v258
    %v291 = vunpack.c.l.b16 %v259
    %v292 = vunpack.c.l.b16 %v260
    %v293 = vunpack.c.l.b16 %v261
    %v294 = vunpack.c.l.b16 %v262
    %v295 = vunpack.c.l.b16 %v263
    %v296 = vunpack.c.l.b16 %v264
    %v297 = vunpack.c.l.b16 %v265
    %v298 = vpack.c.b16 %v283, %v282
    %v299 = vpack.c.b16 %v285, %v284
    %v300 = vpack.c.b16 %v287, %v286
    %v301 = vpack.c.b16 %v289, %v288
    %v302 = vpack.c.b16 %v291, %v290
    %v303 = vpack.c.b16 %v293, %v292
    %v304 = vpack.c.b16 %v295, %v294
    %v305 = vpack.c.b16 %v297, %v296
    %314 = vmatprep.subr.bf16.mxu0 0
    %315 = vmatpush1.bf16.msra.mxu0 %v298
    %316 = vmatprep.subr.bf16.mxu0 0
    %317 = vmatpush1.bf16.msra.mxu0 %v299
    %318 = vmatprep.subr.bf16.mxu0 0
    %319 = vmatpush1.bf16.msra.mxu0 %v300
    %320 = vmatprep.subr.bf16.mxu0 0
    %321 = vmatpush1.bf16.msra.mxu0 %v301
    %322 = vmatprep.subr.bf16.mxu0 0
    %323 = vmatpush1.bf16.msra.mxu0 %v302
    %324 = vmatprep.subr.bf16.mxu0 0
    %325 = vmatpush1.bf16.msra.mxu0 %v303
    %326 = vmatprep.subr.bf16.mxu0 0
    %327 = vmatpush1.bf16.msra.mxu0 %v304
    %328 = vmatprep.subr.bf16.mxu0 0
    %329 = vmatpush1.bf16.msra.mxu0 %v305
    %330 = vmatprep.subr.bf16.mxu0 0
    %331 = vmatpush1.bf16.msra.mxu0 0
    %332 = vmatprep.subr.bf16.mxu0 0
    %333 = vmatpush1.bf16.msra.mxu0 0
    %334 = vmatprep.subr.bf16.mxu0 0
    %335 = vmatpush1.bf16.msra.mxu0 0
    %336 = vmatprep.subr.bf16.mxu0 0
    %337 = vmatpush1.bf16.msra.mxu0 0
    %338 = vmatprep.subr.bf16.mxu0 0
    %339 = vmatpush1.bf16.msra.mxu0 0
    %340 = vmatprep.subr.bf16.mxu0 0
    %341 = vmatpush1.bf16.msra.mxu0 0
    %342 = vmatprep.subr.bf16.mxu0 0
    %343 = vmatpush1.bf16.msra.mxu0 0
    %344 = vmatprep.subr.bf16.mxu0 0
    %345 = vmatpush1.bf16.msra.mxu0 0
    %346 = vmatprep.mubr.bf16.mxu0 0
    %347 = vmatmul.mubr.bf16.gmra.mrb[0].mxu0 %v249
    %v348 = vpop.f32.mrb[0].mxu0
    %v349 = vadd.f32 0.0, %v348
    %v350 = vpop.f32.mrb[0].mxu0
    %v351 = vpop.f32.mrb[0].mxu0
    %v352 = vpop.f32.mrb[0].mxu0
    %353 = vdwg.mxu0
    %v354 = vmax.f32 %v349, 0.0
    %v355 = vpack.c.bf16 %v354, %v354
    %s356 = scalar_lea.vmem [#allocation8], 64
    %v357 = vld [vmem:[%s356] sm:$0xf]
    %v358 = vld [vmem:[%s356 + $0x4] sm:$0xf]
    %v359 = vld [vmem:[%s356 + $0x8] sm:$0xf]
    %v360 = vld [vmem:[%s356 + $0xc] sm:$0xf]
    %v361 = vld [vmem:[%s356 + $0x10] sm:$0xf]
    %v362 = vld [vmem:[%s356 + $0x14] sm:$0xf]
    %v363 = vld [vmem:[%s356 + $0x18] sm:$0xf]
    %v364 = vld [vmem:[%s356 + $0x1c] sm:$0xf]
    %v365 = vld [vmem:[%s356 + $0x20] sm:$0xf]
    %v366 = vld [vmem:[%s356 + $0x24] sm:$0xf]
    %v367 = vld [vmem:[%s356 + $0x28] sm:$0xf]
    %v368 = vld [vmem:[%s356 + $0x2c] sm:$0xf]
    %v369 = vld [vmem:[%s356 + $0x30] sm:$0xf]
    %v370 = vld [vmem:[%s356 + $0x34] sm:$0xf]
    %v371 = vld [vmem:[%s356 + $0x38] sm:$0xf]
    %v372 = vld [vmem:[%s356 + $0x3c] sm:$0xf]
    %v389 = vunpack.c.l.b16 %v357
    %v390 = vunpack.c.l.b16 %v358
    %v391 = vunpack.c.l.b16 %v359
    %v392 = vunpack.c.l.b16 %v360
    %v393 = vunpack.c.l.b16 %v361
    %v394 = vunpack.c.l.b16 %v362
    %v395 = vunpack.c.l.b16 %v363
    %v396 = vunpack.c.l.b16 %v364
    %v397 = vunpack.c.l.b16 %v365
    %v398 = vunpack.c.l.b16 %v366
    %v399 = vunpack.c.l.b16 %v367
    %v400 = vunpack.c.l.b16 %v368
    %v401 = vunpack.c.l.b16 %v369
    %v402 = vunpack.c.l.b16 %v370
    %v403 = vunpack.c.l.b16 %v371
    %v404 = vunpack.c.l.b16 %v372
    %v405 = vpack.c.b16 %v390, %v389
    %v406 = vpack.c.b16 %v392, %v391
    %v407 = vpack.c.b16 %v394, %v393
    %v408 = vpack.c.b16 %v396, %v395
    %v409 = vpack.c.b16 %v398, %v397
    %v410 = vpack.c.b16 %v400, %v399
    %v411 = vpack.c.b16 %v402, %v401
    %v412 = vpack.c.b16 %v404, %v403
    %421 = vmatprep.subr.bf16.mxu0 0
    %422 = vmatpush1.bf16.msra.mxu0 %v405
    %423 = vmatprep.subr.bf16.mxu0 0
    %424 = vmatpush1.bf16.msra.mxu0 %v406
    %425 = vmatprep.subr.bf16.mxu0 0
    %426 = vmatpush1.bf16.msra.mxu0 %v407
    %427 = vmatprep.subr.bf16.mxu0 0
    %428 = vmatpush1.bf16.msra.mxu0 %v408
    %429 = vmatprep.subr.bf16.mxu0 0
    %430 = vmatpush1.bf16.msra.mxu0 %v409
    %431 = vmatprep.subr.bf16.mxu0 0
    %432 = vmatpush1.bf16.msra.mxu0 %v410
    %433 = vmatprep.subr.bf16.mxu0 0
    %434 = vmatpush1.bf16.msra.mxu0 %v411
    %435 = vmatprep.subr.bf16.mxu0 0
    %436 = vmatpush1.bf16.msra.mxu0 %v412
    %437 = vmatprep.subr.bf16.mxu0 0
    %438 = vmatpush1.bf16.msra.mxu0 0
    %439 = vmatprep.subr.bf16.mxu0 0
    %440 = vmatpush1.bf16.msra.mxu0 0
    %441 = vmatprep.subr.bf16.mxu0 0
    %442 = vmatpush1.bf16.msra.mxu0 0
    %443 = vmatprep.subr.bf16.mxu0 0
    %444 = vmatpush1.bf16.msra.mxu0 0
    %445 = vmatprep.subr.bf16.mxu0 0
    %446 = vmatpush1.bf16.msra.mxu0 0
    %447 = vmatprep.subr.bf16.mxu0 0
    %448 = vmatpush1.bf16.msra.mxu0 0
    %449 = vmatprep.subr.bf16.mxu0 0
    %450 = vmatpush1.bf16.msra.mxu0 0
    %451 = vmatprep.subr.bf16.mxu0 0
    %452 = vmatpush1.bf16.msra.mxu0 0
    %453 = vmatprep.mubr.bf16.mxu0 0
    %454 = vmatmul.mubr.bf16.gmra.mrb[0].mxu0 %v355
    %v455 = vpop.f32.mrb[0].mxu0
    %v456 = vadd.f32 0.0, %v455
    %v457 = vpop.f32.mrb[0].mxu0
    %v458 = vpop.f32.mrb[0].mxu0
    %v459 = vpop.f32.mrb[0].mxu0
    %460 = vdwg.mxu0
    %v461 = vmin.f32 %v456, 2.0
    %v462 = vtanh.pop %v461
    %v463 = vsel %vm83, 1, 0
    %vm464 = vcmp.eq.s32.totalorder %v463, 1
    %v465 = vsel %vm464, %v462, %v461
    %v466 = vsel %vm82, 1, 0
    %vm467 = vcmp.eq.s32.totalorder %v466, 1
    %v468 = vsel %vm467, %v248, 0.0
    %v469 = vadd.f32 %v465, %v468
    %v470 = vpack.c.bf16 %v469, %v469
    %471 = vst [vmem:[#allocation10] sm:$0xf] %v470
    // Predicated region
    $region42: #{tpu_custom_call.1} parent=1 // pred_check
      _
    $region43: #{tpu_custom_call.1} parent=1 // pred_check_branch
      %473 = sbr.rel (0) target = $region45
    $region44: #{tpu_custom_call.1} parent=1 // pred_region
      %s475 = ssub.s32 64, 64
      %476 = vsyncadd [#allocation4], %s475
      %s478 = sshll.u32 [#allocation10], 4
      %s479 = int_to_ptr.vmem [resolvable:$true] %s478
      %481 = dma.vmem_to_hbm [thread:$0]  %s479, 64, %s6, [#allocation4]
    $region45: #{tpu_custom_call.1} parent=1 // pred_fallthru
      _
    // Predicated region
    $region46: #{tpu_custom_call.1} parent=1 // pred_check
      _
    $region47: #{tpu_custom_call.1} parent=1 // pred_check_branch
      %483 = sbr.rel (0) target = $region49
    $region48: #{tpu_custom_call.1} parent=1 // pred_region
      %484 = dma.done [#allocation4], 64
    $region49: #{tpu_custom_call.1} parent=1 // pred_fallthru
      _
    %485 = vsyncpa [#allocation3], 1
    %486 = vsyncpa [#allocation6], 1
    %487 = vsyncpa [#allocation9], 1
    %488 = vsyncpa [#allocation4], 1

</llo_original>
